<compile_context>
chip_gen: v7x
topology: tpu7x:2x2x1
jax: 0.10.0
libtpu: 0.0.40
codegen_flags: <defaults>
</compile_context>

<pallas_src>
import functools

import numpy as np
import jax
import jax.numpy as jnp
from jax.experimental import pallas as pl
from jax.experimental.pallas import tpu as pltpu

LANE = 128
SUBLANE = 8
MAX_ROWS_PER_BLOCK = 8192        # (8192, 128) f32 = 4 MiB per block
SMALL_N_MAX = 65536              # <= this -> unpadded full-block fast path
VMEM_LIMIT_BYTES = 48 * 1024 * 1024  # fits every generation (v7x phys = 64 MiB)


# ----------------------------------------------------------------------------
# Minimal stand-in for the original `Config` (synthetic, deterministic).
# ----------------------------------------------------------------------------
class Config:
    def __init__(self, intensities):
        self.INTENSITIES = np.asarray(intensities, dtype=np.float32)
        self.NUM_SDFS = self.INTENSITIES.shape[0]


# ----------------------------------------------------------------------------
# Kernel body (shared by both paths):
#   out = default + clamp(inty, -1, 1) * bandwidth
#   bw_ref      : (1,) float32 in SMEM
#   inty_ref    : float32 tile in VMEM
#   default_ref : float32 tile in VMEM (same shape)
#   out_ref     : float32 tile in VMEM (same shape)
# ----------------------------------------------------------------------------
def _intensities_kernel(bw_ref, inty_ref, default_ref, out_ref):
    bw = bw_ref[0]
    out_ref[...] = default_ref[...] + jnp.clip(inty_ref[...], -1.0, 1.0) * bw


# ----------------------------------------------------------------------------
# Small-N path: full-extent blocks, native (1,1,N) layout, single grid step.
# ----------------------------------------------------------------------------
@jax.jit
def _forward_small(bw, inty, default):
    return pl.pallas_call(
        _intensities_kernel,
        out_shape=jax.ShapeDtypeStruct(inty.shape, jnp.float32),
        in_specs=[
            pl.BlockSpec(memory_space=pltpu.MemorySpace.SMEM),   # bandwidth
            pl.BlockSpec(memory_space=pltpu.MemorySpace.VMEM),   # inty
            pl.BlockSpec(memory_space=pltpu.MemorySpace.VMEM),   # default
        ],
        out_specs=pl.BlockSpec(memory_space=pltpu.MemorySpace.VMEM),
    )(bw, inty, default)


# ----------------------------------------------------------------------------
# Large-N path: sublane-dense (rows, 128) slabs, ~4 MiB blocks, parallel grid.
# The slice/reshape back to (1,1,N) lives inside the same jit executable.
# ----------------------------------------------------------------------------
@functools.partial(jax.jit, static_argnames=("rows_per_block", "n"))
def _forward_slab(bw, inty2d, default2d, *, rows_per_block, n):
    total_rows, lanes = inty2d.shape
    grid = (total_rows // rows_per_block,)
    out2d = pl.pallas_call(
        _intensities_kernel,
        out_shape=jax.ShapeDtypeStruct((total_rows, lanes), jnp.float32),
        grid=grid,
        in_specs=[
            pl.BlockSpec(memory_space=pltpu.MemorySpace.SMEM),        # bandwidth
            pl.BlockSpec((rows_per_block, lanes), lambda i: (i, 0)),  # inty
            pl.BlockSpec((rows_per_block, lanes), lambda i: (i, 0)),  # default
        ],
        out_specs=pl.BlockSpec((rows_per_block, lanes), lambda i: (i, 0)),
        compiler_params=pltpu.CompilerParams(
            dimension_semantics=("parallel",),
            vmem_limit_bytes=VMEM_LIMIT_BYTES,
        ),
    )(bw, inty2d, default2d)
    return out2d.reshape(1, 1, -1)[..., :n]


def _slab_layout(n: int):
    """Sublane-aligned (total_rows, rows_per_block) for a length-n flat vector."""
    rows = -(-n // LANE)
    rows = -(-rows // SUBLANE) * SUBLANE
    num_blocks = -(-rows // MAX_ROWS_PER_BLOCK)
    rows_per_block = -(-rows // num_blocks)
    rows_per_block = -(-rows_per_block // SUBLANE) * SUBLANE
    total_rows = num_blocks * rows_per_block
    return total_rows, rows_per_block


# ----------------------------------------------------------------------------
# Module wrapper mirroring Intensities.__init__ (plain JAX glue).
# ----------------------------------------------------------------------------
class IntensitiesJax:
    def __init__(self, config: Config, learnable: bool = False,
                 init: np.ndarray = np.array([0.3, 0.5]), bandwidth: float = 0.05):
        assert isinstance(config, Config)
        assert isinstance(learnable, bool)
        assert isinstance(init, np.ndarray) and init.ndim == 1
        assert isinstance(bandwidth, float) and 0.0 < bandwidth < 1.0
        if learnable:
            assert config.NUM_SDFS == init.shape[0]
            self.inty = jnp.asarray(init, dtype=jnp.float32).reshape(1, 1, -1)
            self.default = 0.0 * jnp.asarray(config.INTENSITIES,
                                             dtype=jnp.float32).reshape(1, 1, -1)
        else:
            self.inty = 0.0 * jnp.asarray(config.INTENSITIES,
                                          dtype=jnp.float32).reshape(1, 1, -1)
            self.default = jnp.asarray(config.INTENSITIES,
                                       dtype=jnp.float32).reshape(1, 1, -1)
        self.config = config
        self.bandwidth = bandwidth

        # ---- one-time prep hoisted out of the per-call path ----
        self._bw = jnp.full((1,), bandwidth, dtype=jnp.float32)
        self._n = int(self.inty.shape[-1])
        self._use_slab = self._n > SMALL_N_MAX
        if self._use_slab:
            total_rows, rows_per_block = _slab_layout(self._n)
            pad = total_rows * LANE - self._n
            self._inty_slab = jnp.pad(
                self.inty.reshape(-1), (0, pad)).reshape(total_rows, LANE)
            self._default_slab = jnp.pad(
                self.default.reshape(-1), (0, pad)).reshape(total_rows, LANE)
            self._rows_per_block = rows_per_block
        # TODO(synk): if `inty` is updated in place during training (learnable),
        # the cached slab layout must be refreshed; the small-N path always
        # reads self.inty / self.default directly so it needs no refresh.

    def __call__(self) -> jax.Array:
        if not self._use_slab:
            return _forward_small(self._bw, self.inty, self.default)
        return _forward_slab(self._bw, self._inty_slab, self._default_slab,
                             rows_per_block=self._rows_per_block, n=self._n)


if __name__ == "__main__":
    key = jax.random.PRNGKey(0)

    # ---- Case 1: non-learnable, NUM_SDFS = 8 (inty = 0, default = INTENSITIES)
    num_sdfs = 8
    base_intensities = np.asarray(
        jax.random.uniform(key, (num_sdfs,), dtype=jnp.float32))
    config = Config(base_intensities)
    mod_fixed = IntensitiesJax(config, learnable=False,
                               init=np.zeros(num_sdfs), bandwidth=0.05)
    out_fixed = jax.block_until_ready(mod_fixed())
    ref_fixed = mod_fixed.default + jnp.clip(mod_fixed.inty, -1, 1) * 0.05
    assert out_fixed.shape == (1, 1, num_sdfs)
    np.testing.assert_allclose(np.asarray(out_fixed), np.asarray(ref_fixed),
                               rtol=1e-6, atol=1e-6)

    # ---- Case 2: learnable, init outside [-1, 1] so the clamp is exercised.
    init = np.linspace(-1.5, 1.5, num_sdfs).astype(np.float64)
    mod_learn = IntensitiesJax(config, learnable=True, init=init, bandwidth=0.05)
    out_learn = jax.block_until_ready(mod_learn())
    ref_learn = mod_learn.default + jnp.clip(mod_learn.inty, -1, 1) * 0.05
    np.testing.assert_allclose(np.asarray(out_learn), np.asarray(ref_learn),
                               rtol=1e-6, atol=1e-6)

    # ---- Case 3: non-lane-aligned NUM_SDFS = 300 and a different bandwidth
    #              (same compiled small-path kernel; no padding, no slicing).
    num_sdfs3 = 300
    base3 = np.asarray(jax.random.uniform(jax.random.PRNGKey(1), (num_sdfs3,),
                                          dtype=jnp.float32))
    config3 = Config(base3)
    init3 = np.asarray(jax.random.normal(jax.random.PRNGKey(2), (num_sdfs3,),
                                         dtype=jnp.float32) * 2.0,
                       dtype=np.float64)
    mod3 = IntensitiesJax(config3, learnable=True, init=init3, bandwidth=0.25)
    out3 = jax.block_until_ready(mod3())
    ref3 = mod3.default + jnp.clip(mod3.inty, -1, 1) * 0.25
    assert out3.shape == (1, 1, num_sdfs3)
    np.testing.assert_allclose(np.asarray(out3), np.asarray(ref3),
                               rtol=1e-6, atol=1e-6)

    # ---- Case 4: large-N slab path (exercises dense (rows,128) tiling).
    num_sdfs4 = 70_000
    base4 = np.asarray(jax.random.uniform(jax.random.PRNGKey(3), (num_sdfs4,),
                                          dtype=jnp.float32))
    config4 = Config(base4)
    mod4 = IntensitiesJax(config4, learnable=False,
                          init=np.zeros(num_sdfs4), bandwidth=0.1)
    out4 = jax.block_until_ready(mod4())
    ref4 = mod4.default + jnp.clip(mod4.inty, -1, 1) * 0.1
    assert out4.shape == (1, 1, num_sdfs4)
    np.testing.assert_allclose(np.asarray(out4), np.asarray(ref4),
                               rtol=1e-6, atol=1e-6)

    print("KERNEL_OK")
</pallas_src>

<mosaic_0001>
module attributes {stable_mosaic.version = 11 : i64} {
  func.func @_intensities_kernel(%arg0: memref<1xf32, #tpu.memory_space<smem>>, %arg1: memref<1x1x8xf32, #tpu.memory_space<vmem>>, %arg2: memref<1x1x8xf32, #tpu.memory_space<vmem>>, %arg3: memref<1x1x8xf32, #tpu.memory_space<vmem>>) attributes {dimension_semantics = [], scalar_prefetch = 0 : i64, scratch_operands = 0 : i64, tpu.core_type = #tpu.core_type<tc>} {
    %c0 = arith.constant 0 : index
    %0 = memref.load %arg0[%c0] : memref<1xf32, #tpu.memory_space<smem>>
    %c0_0 = arith.constant 0 : index
    %c0_1 = arith.constant 0 : index
    %c0_2 = arith.constant 0 : index
    %1 = vector.load %arg2[%c0_0, %c0_1, %c0_2] : memref<1x1x8xf32, #tpu.memory_space<vmem>>, vector<1x1x8xf32>
    %c0_3 = arith.constant 0 : index
    %c0_4 = arith.constant 0 : index
    %c0_5 = arith.constant 0 : index
    %2 = vector.load %arg1[%c0_3, %c0_4, %c0_5] : memref<1x1x8xf32, #tpu.memory_space<vmem>>, vector<1x1x8xf32>
    %cst = arith.constant -1.000000e+00 : f32
    %cst_6 = arith.constant 1.000000e+00 : f32
    %3 = vector.broadcast %cst : f32 to vector<1x1x8xf32>
    %4 = arith.maximumf %3, %2 : vector<1x1x8xf32>
    %5 = vector.broadcast %cst_6 : f32 to vector<1x1x8xf32>
    %6 = arith.minimumf %5, %4 : vector<1x1x8xf32>
    %7 = vector.broadcast %0 : f32 to vector<1x1x8xf32>
    %8 = arith.mulf %6, %7 : vector<1x1x8xf32>
    %9 = arith.addf %1, %8 : vector<1x1x8xf32>
    %c0_7 = arith.constant 0 : index
    %c0_8 = arith.constant 0 : index
    %c0_9 = arith.constant 0 : index
    %10 = vector.load %arg3[%c0_7, %c0_8, %c0_9] : memref<1x1x8xf32, #tpu.memory_space<vmem>>, vector<1x1x8xf32>
    tpu.vector_store %arg3[%c0_7, %c0_8, %c0_9], %9 {strides = array<i32>} : memref<1x1x8xf32, #tpu.memory_space<vmem>>, vector<1x1x8xf32>,
    return
  }
}

</mosaic_0001>

<llo_original>
// kernel: _forward_small.1
$region0: #{_forward_small.1}
  #allocation0 [shape = 'u32[]', space=smem, size = 0x4, offset = 0x4, fixed_abs, tag = 'smem constant byte address 0x4 - core index']
  #allocation1 [shape = 'u32[144,128]{1,0:T(1,128)}', space=vmem, size = 0x12000, scoped, tag = 'internal scratch']
  #allocation2 [shape = 'f32[1]{0:T(128)S(6)}', space=smem, size = 0x200, scoped, tag = 'scoped memory for _forward_small.1']
  %s0 = inlined_call_operand.<no memory space> [shape: f32[1], index: 0, kind: input, shape index: {}]
  %s1 = inlined_call_operand.vmem [shape: f32[1,1,8], index: 1, kind: input, shape index: {}]
  %s2 = inlined_call_operand.vmem [shape: f32[1,1,8], index: 2, kind: input, shape index: {}]
  %s3 = inlined_call_operand.hbm [shape: f32[1,1,8], index: 3, kind: output, shape index: {}]
  %s4 = sld [smem:[#allocation0]]
  $region22: #{_forward_small.1} parent=0
    _
  %s6 = ssub.s32 1, %s4
  %s7 = scalar_select 0, %s6, %s4
  %8 = sst [smem:[#allocation2]] %s0
  $region1: #{_forward_small.1} parent=0
    #allocation3 [shape = 'u8[512]{0}', space=vmem, size = 0x400, scoped, tag = 'output window, operand 0, single buffered']
    #allocation4 [shape = 's32[1]{0}', space=sflag, size = 0x4, scoped, tag = 'scoped memory for _forward_small.1']
    %9 = vsyncpa [#allocation4], 0
    // Predicated region
    $region2: #{_forward_small.1} parent=1 // pred_check
      _
    $region3: #{_forward_small.1} parent=1 // pred_check_branch
      %11 = sbr.rel (0) target = $region5
    $region4: #{_forward_small.1} parent=1 // pred_region
      _
    $region5: #{_forward_small.1} parent=1 // pred_fallthru
      _
    // Predicated region
    $region6: #{_forward_small.1} parent=1 // pred_check
      _
    $region7: #{_forward_small.1} parent=1 // pred_check_branch
      %13 = sbr.rel (0) target = $region9
    $region8: #{_forward_small.1} parent=1 // pred_region
      _
    $region9: #{_forward_small.1} parent=1 // pred_fallthru
      _
    // Predicated region
    $region10: #{_forward_small.1} parent=1 // pred_check
      _
    $region11: #{_forward_small.1} parent=1 // pred_check_branch
      %15 = sbr.rel (0) target = $region13
    $region12: #{_forward_small.1} parent=1 // pred_region
      _
    $region13: #{_forward_small.1} parent=1 // pred_fallthru
      _
    %s16 = sld [smem:[#allocation2]]
    %v17 = vld [vmem:[%s2] sm:$0x1]
    %v18 = vld [vmem:[%s1] sm:$0x1]
    %v19 = vmax.f32 %v18, -1.0
    %v20 = vmin.f32 %v19, 1.0
    %v21 = vstv %s16
    %v22 = vmul.f32 %v20, %v21
    %v23 = vadd.f32 %v17, %v22
    %vm24 = vcmask 57344
    %25 = vst.msk [vmem:[#allocation3] sm:$0x1] %vm24, %v23
    // Predicated region
    $region14: #{_forward_small.1} parent=1 // pred_check
      _
    $region15: #{_forward_small.1} parent=1 // pred_check_branch
      %27 = sbr.rel (0) target = $region17
    $region16: #{_forward_small.1} parent=1 // pred_region
      %s29 = ssub.s32 16, 16
      %30 = vsyncadd [#allocation4], %s29
      %s32 = sshll.u32 [#allocation3], 4
      %s33 = int_to_ptr.vmem [resolvable:$true] %s32
      %35 = dma.vmem_to_hbm [thread:$0]  %s33, 16, %s3, [#allocation4]
    $region17: #{_forward_small.1} parent=1 // pred_fallthru
      _
    // Predicated region
    $region18: #{_forward_small.1} parent=1 // pred_check
      _
    $region19: #{_forward_small.1} parent=1 // pred_check_branch
      %37 = sbr.rel (0) target = $region21
    $region20: #{_forward_small.1} parent=1 // pred_region
      %38 = dma.done [#allocation4], 16
    $region21: #{_forward_small.1} parent=1 // pred_fallthru
      _
    %39 = vsyncpa [#allocation4], 1

</llo_original>
